<compile_context>
chip_gen: v7x
topology: tpu7x:2x2x1
jax: 0.10.0
libtpu: 0.0.40
codegen_flags: <defaults>
</compile_context>

<pallas_src>
import jax
import jax.numpy as jnp
from jax.experimental import pallas as pl
from jax.experimental.pallas import tpu as pltpu


def _round_up(x, m):
    return ((x + m - 1) // m) * m


# ---------------------------------------------------------------------------
# Fused kernel: backbone -> class weights -> class scores.
# One few-shot episode per grid step; all intermediates stay in VMEM/vregs.
# ---------------------------------------------------------------------------
def _fewshot_kernel(x_ref, wb_ref, bb_ref, ysum_ref, mte_ref, o_ref):
    eps = 1e-12
    cin = x_ref.shape[1]
    ntr_hw = ysum_ref.shape[1]          # Ntr * HW (static)

    # ---- stand-in backbone: 1x1 conv (channel mix) + ReLU over all Ntr+Nte
    # images.  Contraction depth Cin=3 is too shallow for the MXU, so compute
    # it as Cin VPU FMAs with broadcasting (review item).
    x = x_ref[0]                                     # (Cin, N*HW)  f32
    wb = wb_ref[...]                                 # (Cout, Cin)  f32
    f = bb_ref[...] + wb[:, 0:1] * x[0:1, :]         # (Cout, N*HW)
    for i in range(1, cin):
        f = f + wb[:, i:i + 1] * x[i:i + 1, :]
    f = jnp.maximum(f, 0.0)                          # (C, N*HW)  f32

    f_b = f.astype(jnp.bfloat16)                     # bf16 MXU operands, f32 accum
    ftrain = f_b[:, :ntr_hw]                         # (C, Ntr*HW)
    ftest = f_b[:, ntr_hw:]                          # (C, Nte*HW)

    # ---- class weights.  The module takes the spatial mean of the RAW class
    # prototype and L2-normalizes it along channels.  The per-class support
    # count and the 1/HW mean scale both cancel under that normalization, so
    #   w_pre[c,k] = sum_{n,s} ytrain[n,k] * ftrain[c,n,s]
    # is one matmul against the HW-broadcast ytrain operand (no I_HW Kronecker).
    w_pre = jnp.dot(ftrain, ysum_ref[0],
                    preferred_element_type=jnp.float32)              # (C, K_pad)
    inv_w = jax.lax.rsqrt(
        jnp.maximum(jnp.sum(w_pre * w_pre, axis=0, keepdims=True), eps * eps))
    w = (w_pre * inv_w).astype(jnp.bfloat16)                         # (C, K_pad)

    # ---- scores.  The module computes (w . normalize(ftest)) * ||ftest|| per
    # pixel then means over pixels; the normalize / ||ftest|| pair cancels, so
    #   score[k,q] = w[:,k] . mean_s ftest[:,q,s].
    # Contract over C first (only K_pad result rows), then the tiny lane-dense
    # spatial-mean matmul so the output store is a full 128-lane slab.
    scores_px = jax.lax.dot_general(
        w, ftest, (((0,), (0,)), ((), ())),
        preferred_element_type=jnp.float32)                          # (K_pad, Nte*HW)
    scores = jnp.dot(scores_px.astype(jnp.bfloat16), mte_ref[...],
                     preferred_element_type=jnp.float32)             # (K_pad, NTE_PAD)
    o_ref[0] = scores


# ---------------------------------------------------------------------------
# Eval-mode Model.forward
# ---------------------------------------------------------------------------
def model_forward(xtrain, xtest, ytrain, ytest, w_base, b_base):
    del ytest  # unused by the PyTorch forward as well
    b, ntr, cin, h, w_sp = xtrain.shape
    nte = xtest.shape[1]
    k = ytrain.shape[2]
    hw = h * w_sp
    n = ntr + nte
    cout = w_base.shape[0]
    k_pad = _round_up(k, 8)
    nte_pad = _round_up(max(nte, 128), 128)

    # --- layout plumbing in the wrapper (tiny XLA ops, once per call) ---
    # image-major lane axis: (b, Cin, N*HW), columns ordered (image, pixel)
    x_all = jnp.concatenate([xtrain, xtest], axis=1).reshape(b, n, cin, hw)
    x_flat = jnp.transpose(x_all, (0, 2, 1, 3)).reshape(b, cin, n * hw)

    # HW-broadcast selection operand: ysum[b, n*HW + s, kk] = ytrain[b, n, kk]
    # (few KB per episode -- replaces the old (Ntr*HW)x(K*HW) Kronecker block)
    y_pad = jnp.pad(ytrain.astype(jnp.float32), ((0, 0), (0, 0), (0, k_pad - k)))
    ysum = jnp.broadcast_to(y_pad[:, :, None, :], (b, ntr, hw, k_pad))
    ysum = ysum.reshape(b, ntr * hw, k_pad).astype(jnp.bfloat16)

    # zero-padded grouped spatial-mean matrix (shape-only constant, fetched once)
    mte = jnp.zeros((nte * hw, nte_pad), jnp.float32)
    mte = mte.at[:, :nte].set(
        jnp.repeat(jnp.eye(nte, dtype=jnp.float32), hw, axis=0) / hw)
    mte = mte.astype(jnp.bfloat16)

    scores_pad = pl.pallas_call(
        _fewshot_kernel,
        out_shape=jax.ShapeDtypeStruct((b, k_pad, nte_pad), jnp.float32),
        grid=(b,),
        in_specs=[
            pl.BlockSpec((1, cin, n * hw), lambda i: (i, 0, 0)),      # per-episode DMA
            pl.BlockSpec((cout, cin), lambda i: (0, 0)),              # fetched once
            pl.BlockSpec((cout, 1), lambda i: (0, 0)),                # fetched once
            pl.BlockSpec((1, ntr * hw, k_pad), lambda i: (i, 0, 0)),  # per-episode (few KB)
            pl.BlockSpec((nte * hw, nte_pad), lambda i: (0, 0)),      # fetched once
        ],
        out_specs=pl.BlockSpec((1, k_pad, nte_pad), lambda i: (i, 0, 0)),
        # TODO(synk): verify "parallel" shards grid=(b,) across v7x's two
        #             TensorCores; otherwise switch to CORE_PARALLEL /
        #             pl.core_map with a leading core axis.
        compiler_params=pltpu.CompilerParams(
            dimension_semantics=("parallel",),
            vmem_limit_bytes=32 * 1024 * 1024),
    )(x_flat, w_base, b_base, ysum, mte)

    scores = scores_pad[:, :k, :nte]                               # (b, K, Nte)
    return jnp.transpose(scores, (0, 2, 1)).reshape(b * nte, k)    # (b*Nte, K)


# ---------------------------------------------------------------------------
# Pure-JAX reference: the UN-simplified module math (class-count division,
# spatial mean of the raw prototype, normalize(ftest) * ||ftest||) to validate
# the kernel's algebraic simplifications.
# ---------------------------------------------------------------------------
def reference_forward(xtrain, xtest, ytrain, w_base, b_base):
    b, num_train, cin, h, wd = xtrain.shape
    num_test = xtest.shape[1]
    k = ytrain.shape[2]
    hw = h * wd
    eps = 1e-12

    x = jnp.concatenate(
        [xtrain.reshape(-1, cin, hw), xtest.reshape(-1, cin, hw)], axis=0)
    f = jnp.maximum(jnp.einsum("oc,ncs->nos", w_base, x) + b_base[None, :, :], 0.0)
    nfeat = f.shape[1]

    ytrain_t = jnp.transpose(ytrain, (0, 2, 1))                       # (b, K, Ntr)
    ftr = f[: b * num_train].reshape(b, num_train, nfeat * hw)
    proto = jnp.einsum("bkn,bnd->bkd", ytrain_t, ftr) / jnp.sum(
        ytrain_t, axis=2, keepdims=True)
    proto = proto.reshape(b, k, nfeat, hw)
    fte = f[b * num_train:].reshape(b, num_test, nfeat, hw)

    # spatial mean of the RAW prototype, then channel L2 normalization
    w = jnp.mean(proto, axis=3)                                       # (b, K, C)
    w = w / jnp.maximum(jnp.linalg.norm(w, axis=2, keepdims=True), eps)

    l = jnp.linalg.norm(fte, axis=2)                                  # (b, Nte, HW)
    t_n = fte / jnp.maximum(l[:, :, None, :], eps)
    s = jnp.einsum("bncs,bkc->bnks", t_n, w) * l[:, :, None, :]
    return jnp.mean(s, axis=-1).reshape(b * num_test, k)


if __name__ == "__main__":
    key = jax.random.PRNGKey(0)
    k1, k2, k3, k4 = jax.random.split(key, 4)

    # small few-shot setup: 2 episodes, 3-way 2-shot, 4 queries, 3x8x8 images
    b, k_way, shots, num_test = 2, 3, 2, 4
    num_train = k_way * shots
    cin, h, w = 3, 8, 8
    nfeat = 16

    xtrain = jax.random.normal(k1, (b, num_train, cin, h, w), jnp.float32)
    xtest = jax.random.normal(k2, (b, num_test, cin, h, w), jnp.float32)

    labels = jnp.concatenate([jnp.arange(k_way, dtype=jnp.int32)] * shots)
    ytrain = jnp.broadcast_to(
        jax.nn.one_hot(labels, k_way, dtype=jnp.float32), (b, num_train, k_way))
    ytest = jnp.zeros((b, num_test, k_way), jnp.float32)  # unused by forward

    # deterministic stand-in backbone parameters
    w_base = 0.1 * jax.random.normal(k3, (nfeat, cin), jnp.float32)
    b_base = 0.05 * jax.random.normal(k4, (nfeat, 1), jnp.float32)

    out = model_forward(xtrain, xtest, ytrain, ytest, w_base, b_base)
    out = jax.block_until_ready(out)

    ref = reference_forward(xtrain, xtest, ytrain, w_base, b_base)
    assert out.shape == (b * num_test, k_way), out.shape
    # bf16 MXU operands with f32 accumulation: every score term is >= 0 (ReLU
    # features, one-hot labels), so relative error is bounded by bf16 rounding
    # (~1%); 2e-2 rtol is a safe margin.
    assert bool(jnp.allclose(out, ref, rtol=2e-2, atol=1e-3)), (out, ref)

    print("KERNEL_OK")
</pallas_src>

<mosaic_0001>
module attributes {stable_mosaic.version = 11 : i64} {
  func.func @_fewshot_kernel(%arg0: i32, %arg1: memref<1x3x640xf32, #tpu.memory_space<vmem>>, %arg2: memref<16x3xf32, #tpu.memory_space<vmem>>, %arg3: memref<16x1xf32, #tpu.memory_space<vmem>>, %arg4: memref<1x384x8xbf16, #tpu.memory_space<vmem>>, %arg5: memref<256x128xbf16, #tpu.memory_space<vmem>>, %arg6: memref<1x8x128xf32, #tpu.memory_space<vmem>>) attributes {dimension_semantics = [#tpu.dimension_semantics<parallel>], iteration_bounds = array<i64: 2>, scalar_prefetch = 0 : i64, scratch_operands = 0 : i64, tpu.core_type = #tpu.core_type<tc>, window_params = [{transform_indices = @transform_0, window_bounds = array<i64: 1, 3, 640>}, {pipeline_mode = #tpu.pipeline_mode<synchronous>, transform_indices = @transform_1, window_bounds = array<i64: 16, 3>}, {pipeline_mode = #tpu.pipeline_mode<synchronous>, transform_indices = @transform_2, window_bounds = array<i64: 16, 1>}, {transform_indices = @transform_3, window_bounds = array<i64: 1, 384, 8>}, {pipeline_mode = #tpu.pipeline_mode<synchronous>, transform_indices = @transform_4, window_bounds = array<i64: 256, 128>}, {transform_indices = @transform_5, window_bounds = array<i64: 1, 8, 128>}]} {
    %c0 = arith.constant 0 : index
    %c0_0 = arith.constant 0 : index
    %c0_1 = arith.constant 0 : index
    %0 = vector.load %arg1[%c0, %c0_0, %c0_1] : memref<1x3x640xf32, #tpu.memory_space<vmem>>, vector<1x3x640xf32>
    %1 = vector.shape_cast %0 : vector<1x3x640xf32> to vector<3x640xf32>
    %c0_2 = arith.constant 0 : index
    %c0_3 = arith.constant 0 : index
    %2 = vector.load %arg2[%c0_2, %c0_3] : memref<16x3xf32, #tpu.memory_space<vmem>>, vector<16x3xf32>
    %c0_4 = arith.constant 0 : index
    %c0_5 = arith.constant 0 : index
    %3 = vector.load %arg3[%c0_4, %c0_5] : memref<16x1xf32, #tpu.memory_space<vmem>>, vector<16x1xf32>
    %4 = vector.extract_strided_slice %2 {offsets = [0, 0], sizes = [16, 1], strides = [1, 1]} : vector<16x3xf32> to vector<16x1xf32>
    %5 = vector.extract_strided_slice %1 {offsets = [0, 0], sizes = [1, 640], strides = [1, 1]} : vector<3x640xf32> to vector<1x640xf32>
    %6 = vector.broadcast %4 : vector<16x1xf32> to vector<16x640xf32>
    %7 = vector.broadcast %5 : vector<1x640xf32> to vector<16x640xf32>
    %8 = arith.mulf %6, %7 : vector<16x640xf32>
    %9 = vector.broadcast %3 : vector<16x1xf32> to vector<16x640xf32>
    %10 = arith.addf %9, %8 : vector<16x640xf32>
    %11 = vector.extract_strided_slice %2 {offsets = [0, 1], sizes = [16, 1], strides = [1, 1]} : vector<16x3xf32> to vector<16x1xf32>
    %12 = vector.extract_strided_slice %1 {offsets = [1, 0], sizes = [1, 640], strides = [1, 1]} : vector<3x640xf32> to vector<1x640xf32>
    %13 = vector.broadcast %11 : vector<16x1xf32> to vector<16x640xf32>
    %14 = vector.broadcast %12 : vector<1x640xf32> to vector<16x640xf32>
    %15 = arith.mulf %13, %14 : vector<16x640xf32>
    %16 = arith.addf %10, %15 : vector<16x640xf32>
    %17 = vector.extract_strided_slice %2 {offsets = [0, 2], sizes = [16, 1], strides = [1, 1]} : vector<16x3xf32> to vector<16x1xf32>
    %18 = vector.extract_strided_slice %1 {offsets = [2, 0], sizes = [1, 640], strides = [1, 1]} : vector<3x640xf32> to vector<1x640xf32>
    %19 = vector.broadcast %17 : vector<16x1xf32> to vector<16x640xf32>
    %20 = vector.broadcast %18 : vector<1x640xf32> to vector<16x640xf32>
    %21 = arith.mulf %19, %20 : vector<16x640xf32>
    %22 = arith.addf %16, %21 : vector<16x640xf32>
    %cst = arith.constant 0.000000e+00 : f32
    %23 = vector.broadcast %cst : f32 to vector<16x640xf32>
    %24 = arith.maximumf %22, %23 : vector<16x640xf32>
    %25 = arith.truncf %24 : vector<16x640xf32> to vector<16x640xbf16>
    %26 = vector.extract_strided_slice %25 {offsets = [0, 0], sizes = [16, 384], strides = [1, 1]} : vector<16x640xbf16> to vector<16x384xbf16>
    %27 = vector.extract_strided_slice %25 {offsets = [0, 384], sizes = [16, 256], strides = [1, 1]} : vector<16x640xbf16> to vector<16x256xbf16>
    %c0_6 = arith.constant 0 : index
    %c0_7 = arith.constant 0 : index
    %c0_8 = arith.constant 0 : index
    %28 = vector.load %arg4[%c0_6, %c0_7, %c0_8] : memref<1x384x8xbf16, #tpu.memory_space<vmem>>, vector<1x384x8xbf16>
    %29 = vector.shape_cast %28 : vector<1x384x8xbf16> to vector<384x8xbf16>
    %cst_9 = arith.constant dense<0.000000e+00> : vector<16x8xf32>
    %30 = tpu.matmul %26, %29, %cst_9 {dimension_numbers = #tpu.dot_dimension_numbers<[1], [0], [0], [1], [0, 0, 1, 1], [], []>} : vector<16x384xbf16>, vector<384x8xbf16>, vector<16x8xf32> -> vector<16x8xf32>
    %31 = arith.mulf %30, %30 : vector<16x8xf32>
    %cst_10 = arith.constant dense<0.000000e+00> : vector<8xf32>
    %32 = vector.multi_reduction <add>, %31, %cst_10 [0] : vector<16x8xf32> to vector<8xf32>
    %33 = vector.shape_cast %32 : vector<8xf32> to vector<1x8xf32>
    %cst_11 = arith.constant 1.000000e-24 : f32
    %34 = vector.broadcast %cst_11 : f32 to vector<1x8xf32>
    %35 = arith.maximumf %33, %34 : vector<1x8xf32>
    %36 = math.rsqrt %35 : vector<1x8xf32>
    %37 = vector.broadcast %36 : vector<1x8xf32> to vector<16x8xf32>
    %38 = arith.mulf %30, %37 : vector<16x8xf32>
    %39 = arith.truncf %38 : vector<16x8xf32> to vector<16x8xbf16>
    %cst_12 = arith.constant dense<0.000000e+00> : vector<8x256xf32>
    %40 = tpu.matmul %39, %27, %cst_12 {dimension_numbers = #tpu.dot_dimension_numbers<[0], [0], [1], [1], [0, 1, 1, 1], [], []>} : vector<16x8xbf16>, vector<16x256xbf16>, vector<8x256xf32> -> vector<8x256xf32>
    %41 = arith.truncf %40 : vector<8x256xf32> to vector<8x256xbf16>
    %c0_13 = arith.constant 0 : index
    %c0_14 = arith.constant 0 : index
    %42 = vector.load %arg5[%c0_13, %c0_14] : memref<256x128xbf16, #tpu.memory_space<vmem>>, vector<256x128xbf16>
    %cst_15 = arith.constant dense<0.000000e+00> : vector<8x128xf32>
    %43 = tpu.matmul %41, %42, %cst_15 {dimension_numbers = #tpu.dot_dimension_numbers<[1], [0], [0], [1], [0, 0, 1, 1], [], []>} : vector<8x256xbf16>, vector<256x128xbf16>, vector<8x128xf32> -> vector<8x128xf32>
    %c0_16 = arith.constant 0 : index
    %c0_17 = arith.constant 0 : index
    %c0_18 = arith.constant 0 : index
    %44 = vector.load %arg6[%c0_16, %c0_17, %c0_18] : memref<1x8x128xf32, #tpu.memory_space<vmem>>, vector<1x8x128xf32>
    %45 = vector.shape_cast %44 : vector<1x8x128xf32> to vector<8x128xf32>
    %46 = vector.shape_cast %43 : vector<8x128xf32> to vector<1x8x128xf32>
    tpu.vector_store %arg6[%c0_16, %c0_17, %c0_18], %46 {strides = array<i32>} : memref<1x8x128xf32, #tpu.memory_space<vmem>>, vector<1x8x128xf32>,
    return
  }
  func.func @transform_0(%arg0: i32) -> (i32, i32, i32) {
    %c0_i32 = arith.constant 0 : i32
    %c0_i32_0 = arith.constant 0 : i32
    %c0_i32_1 = arith.constant 0 : i32
    return %arg0, %c0_i32, %c0_i32_0 : i32, i32, i32
  }
  func.func @transform_1(%arg0: i32) -> (i32, i32) {
    %c0_i32 = arith.constant 0 : i32
    %c0_i32_0 = arith.constant 0 : i32
    %c0_i32_1 = arith.constant 0 : i32
    return %c0_i32, %c0_i32_0 : i32, i32
  }
  func.func @transform_2(%arg0: i32) -> (i32, i32) {
    %c0_i32 = arith.constant 0 : i32
    %c0_i32_0 = arith.constant 0 : i32
    %c0_i32_1 = arith.constant 0 : i32
    return %c0_i32, %c0_i32_0 : i32, i32
  }
  func.func @transform_3(%arg0: i32) -> (i32, i32, i32) {
    %c0_i32 = arith.constant 0 : i32
    %c0_i32_0 = arith.constant 0 : i32
    %c0_i32_1 = arith.constant 0 : i32
    return %arg0, %c0_i32, %c0_i32_0 : i32, i32, i32
  }
  func.func @transform_4(%arg0: i32) -> (i32, i32) {
    %c0_i32 = arith.constant 0 : i32
    %c0_i32_0 = arith.constant 0 : i32
    %c0_i32_1 = arith.constant 0 : i32
    return %c0_i32, %c0_i32_0 : i32, i32
  }
  func.func @transform_5(%arg0: i32) -> (i32, i32, i32) {
    %c0_i32 = arith.constant 0 : i32
    %c0_i32_0 = arith.constant 0 : i32
    %c0_i32_1 = arith.constant 0 : i32
    return %arg0, %c0_i32, %c0_i32_0 : i32, i32, i32
  }
}

</mosaic_0001>

<llo_original>
// kernel: tpu_custom_call.1
$region0: #{tpu_custom_call.1}
  #allocation0 [shape = 'u32[]', space=smem, size = 0x4, offset = 0x4, fixed_abs, tag = 'smem constant byte address 0x4 - core index']
  #allocation1 [shape = 'u32[144,128]{1,0:T(1,128)}', space=vmem, size = 0x12000, scoped, tag = 'internal scratch']
  %s0 = inlined_call_operand.vmem [shape: f32[2,3,640], index: 0, kind: input, shape index: {}]
  %s1 = inlined_call_operand.vmem [shape: f32[16,3], index: 1, kind: input, shape index: {}]
  %s2 = inlined_call_operand.vmem [shape: f32[16,1], index: 2, kind: input, shape index: {}]
  %s3 = inlined_call_operand.vmem [shape: bf16[2,384,8], index: 3, kind: input, shape index: {}]
  %s4 = inlined_call_operand.vmem [shape: bf16[256,128], index: 4, kind: input, shape index: {}]
  %s5 = inlined_call_operand.hbm [shape: f32[2,8,128], index: 5, kind: output, shape index: {}]
  %s6 = sld [smem:[#allocation0]]
  $region53: #{tpu_custom_call.1} parent=0
    _
  %s8 = ssub.s32 1, %s6
  %s9 = scalar_select 0, %s8, %s6
  $region1: #{tpu_custom_call.1} parent=0
    #allocation2 [shape = 'u8[8192]{0}', space=vmem, size = 0x2000, scoped, tag = 'output window, operand 0']
    #allocation3 [shape = 's32[2]{0}', space=sflag, size = 0x8, scoped, tag = 'scoped memory for tpu_custom_call.1']
    %10 = vsyncpa [#allocation3], 0
    %s11 = scalar_lea.sflag [#allocation3], 1
    %12 = vsyncpa %s11, 0
    loop: start=0, step=1, limit=4
    $region2: #{tpu_custom_call.1} parent=1 // loop_pre_header
      _
    $region3: #{tpu_custom_call.1} parent=1 // loop_header
      %s14 = sphi 0, %s18
      %p15 = scmp.ge.s32.totalorder %s14, 4
      %s24 = sphi 0, %s26
      %s27 = sphi 0, %s24
      %s28 = sphi 0, %s27
      %s44 = sphi 0, %s28
      %s48 = sphi 0, %s48
      %s50 = sphi 0, %s48
      %s51 = sphi 0, %s50
      %s65 = sphi 0, %s51
      %s69 = sphi 0, %s69
      %s71 = sphi 0, %s69
      %s72 = sphi 0, %s71
      %s86 = sphi 0, %s72
      %s92 = sphi 0, %s94
      %s95 = sphi 0, %s92
      %s96 = sphi 0, %s95
      %s112 = sphi 0, %s96
      %s116 = sphi 0, %s116
      %s118 = sphi 0, %s116
      %s119 = sphi 0, %s118
      %s133 = sphi 0, %s119
      %s139 = sphi 0, %s141
      %s142 = sphi 0, %s139
      %s143 = sphi 0, %s142
      %s159 = sphi 0, %s143
    $region4: #{tpu_custom_call.1} parent=1 // loop_header_branch
      %17 = sbr.rel (%p15) target = $region8
    $region5: #{tpu_custom_call.1} parent=1 // loop_body
      %s19 = ssub.s32 %s14, 1
      %s20 = ssub.s32 %s14, 2
      %s21 = sadd.s32 %s14, 1
      %s22 = ssub.s32 %s14, %s21
      %p23 = scmp.eq.s32.totalorder %s22, 0
      %s25 = sadd.s32 %s24, 1
      %s26 = scalar_select %p23, %s24, %s25
      %p29 = pneg %p23
      %p30 = scmp.eq.s32.totalorder %s14, 1
      %p31 = por %p29, %p30
      %p32 = scmp.ne.s32.totalorder %s24, %s27
      %p33 = scmp.eq.s32.totalorder %s14, 0
      %p34 = por %p32, %p33
      %p35 = scmp.ne.s32.totalorder %s24, %s27
      %p36 = scmp.eq.s32.totalorder %s19, 1
      %p37 = por %p35, %p36
      %p38 = scmp.ne.s32.totalorder %s27, %s28
      %p39 = scmp.eq.s32.totalorder %s19, 0
      %p40 = por %p38, %p39
      %p41 = scmp.ne.s32.totalorder %s27, %s28
      %p42 = scmp.eq.s32.totalorder %s20, 1
      %p43 = por %p41, %p42
      %p45 = scmp.ne.s32.totalorder %s28, %s44
      %p46 = scmp.eq.s32.totalorder %s20, 0
      %p47 = por %p45, %p46
      %s49 = sadd.s32 %s48, 1
      %p52 = scmp.eq.s32.totalorder %s14, 1
      %p53 = scmp.ne.s32.totalorder %s48, %s50
      %p54 = scmp.eq.s32.totalorder %s14, 0
      %p55 = por %p53, %p54
      %p56 = scmp.ne.s32.totalorder %s48, %s50
      %p57 = scmp.eq.s32.totalorder %s19, 1
      %p58 = por %p56, %p57
      %p59 = scmp.ne.s32.totalorder %s50, %s51
      %p60 = scmp.eq.s32.totalorder %s19, 0
      %p61 = por %p59, %p60
      %p62 = scmp.ne.s32.totalorder %s50, %s51
      %p63 = scmp.eq.s32.totalorder %s20, 1
      %p64 = por %p62, %p63
      %p66 = scmp.ne.s32.totalorder %s51, %s65
      %p67 = scmp.eq.s32.totalorder %s20, 0
      %p68 = por %p66, %p67
      %s70 = sadd.s32 %s69, 1
      %p73 = scmp.eq.s32.totalorder %s14, 1
      %p74 = scmp.ne.s32.totalorder %s69, %s71
      %p75 = scmp.eq.s32.totalorder %s14, 0
      %p76 = por %p74, %p75
      %p77 = scmp.ne.s32.totalorder %s69, %s71
      %p78 = scmp.eq.s32.totalorder %s19, 1
      %p79 = por %p77, %p78
      %p80 = scmp.ne.s32.totalorder %s71, %s72
      %p81 = scmp.eq.s32.totalorder %s19, 0
      %p82 = por %p80, %p81
      %p83 = scmp.ne.s32.totalorder %s71, %s72
      %p84 = scmp.eq.s32.totalorder %s20, 1
      %p85 = por %p83, %p84
      %p87 = scmp.ne.s32.totalorder %s72, %s86
      %p88 = scmp.eq.s32.totalorder %s20, 0
      %p89 = por %p87, %p88
      %s90 = ssub.s32 %s14, %s21
      %p91 = scmp.eq.s32.totalorder %s90, 0
      %s93 = sadd.s32 %s92, 1
      %s94 = scalar_select %p91, %s92, %s93
      %p97 = pneg %p91
      %p98 = scmp.eq.s32.totalorder %s14, 1
      %p99 = por %p97, %p98
      %p100 = scmp.ne.s32.totalorder %s92, %s95
      %p101 = scmp.eq.s32.totalorder %s14, 0
      %p102 = por %p100, %p101
      %p103 = scmp.ne.s32.totalorder %s92, %s95
      %p104 = scmp.eq.s32.totalorder %s19, 1
      %p105 = por %p103, %p104
      %p106 = scmp.ne.s32.totalorder %s95, %s96
      %p107 = scmp.eq.s32.totalorder %s19, 0
      %p108 = por %p106, %p107
      %p109 = scmp.ne.s32.totalorder %s95, %s96
      %p110 = scmp.eq.s32.totalorder %s20, 1
      %p111 = por %p109, %p110
      %p113 = scmp.ne.s32.totalorder %s96, %s112
      %p114 = scmp.eq.s32.totalorder %s20, 0
      %p115 = por %p113, %p114
      %s117 = sadd.s32 %s116, 1
      %p120 = scmp.eq.s32.totalorder %s14, 1
      %p121 = scmp.ne.s32.totalorder %s116, %s118
      %p122 = scmp.eq.s32.totalorder %s14, 0
      %p123 = por %p121, %p122
      %p124 = scmp.ne.s32.totalorder %s116, %s118
      %p125 = scmp.eq.s32.totalorder %s19, 1
      %p126 = por %p124, %p125
      %p127 = scmp.ne.s32.totalorder %s118, %s119
      %p128 = scmp.eq.s32.totalorder %s19, 0
      %p129 = por %p127, %p128
      %p130 = scmp.ne.s32.totalorder %s118, %s119
      %p131 = scmp.eq.s32.totalorder %s20, 1
      %p132 = por %p130, %p131
      %p134 = scmp.ne.s32.totalorder %s119, %s133
      %p135 = scmp.eq.s32.totalorder %s20, 0
      %p136 = por %p134, %p135
      %s137 = ssub.s32 %s14, %s21
      %p138 = scmp.eq.s32.totalorder %s137, 0
      %s140 = sadd.s32 %s139, 1
      %s141 = scalar_select %p138, %s139, %s140
      %p144 = pneg %p138
      %p145 = scmp.eq.s32.totalorder %s14, 1
      %p146 = por %p144, %p145
      %p147 = scmp.ne.s32.totalorder %s139, %s142
      %p148 = scmp.eq.s32.totalorder %s14, 0
      %p149 = por %p147, %p148
      %p150 = scmp.ne.s32.totalorder %s139, %s142
      %p151 = scmp.eq.s32.totalorder %s19, 1
      %p152 = por %p150, %p151
      %p153 = scmp.ne.s32.totalorder %s142, %s143
      %p154 = scmp.eq.s32.totalorder %s19, 0
      %p155 = por %p153, %p154
      %p156 = scmp.ne.s32.totalorder %s142, %s143
      %p157 = scmp.eq.s32.totalorder %s20, 1
      %p158 = por %p156, %p157
      %p160 = scmp.ne.s32.totalorder %s143, %s159
      %p161 = scmp.eq.s32.totalorder %s20, 0
      %p162 = por %p160, %p161
      %p163 = scmp.le.s32.totalorder 1, %s14
      %p164 = scmp.lt.s32.totalorder %s14, 3
      %p165 = pnand %p163, %p164
      %p166 = pneg %p165
      // Predicated region
      $region9: #{tpu_custom_call.1} parent=5 // pred_check
        _
      $region10: #{tpu_custom_call.1} parent=5 // pred_check_branch
        %168 = sbr.rel (%p165) target = $region12
      $region11: #{tpu_custom_call.1} parent=5 // pred_region
        %s169 = ssub.s32 %s14, 1
        // Predicated region
        $region13: #{tpu_custom_call.1} parent=11 // pred_check
          %p170 = pneg %p61
        $region14: #{tpu_custom_call.1} parent=11 // pred_check_branch
          %172 = sbr.rel (%p170) target = $region16
        $region15: #{tpu_custom_call.1} parent=11 // pred_region
          _
        $region16: #{tpu_custom_call.1} parent=11 // pred_fallthru
          _
        // Predicated region
        $region17: #{tpu_custom_call.1} parent=11 // pred_check
          %p173 = pneg %p82
        $region18: #{tpu_custom_call.1} parent=11 // pred_check_branch
          %175 = sbr.rel (%p173) target = $region20
        $region19: #{tpu_custom_call.1} parent=11 // pred_region
          _
        $region20: #{tpu_custom_call.1} parent=11 // pred_fallthru
          _
        // Predicated region
        $region21: #{tpu_custom_call.1} parent=11 // pred_check
          %p176 = pneg %p129
        $region22: #{tpu_custom_call.1} parent=11 // pred_check_branch
          %178 = sbr.rel (%p176) target = $region24
        $region23: #{tpu_custom_call.1} parent=11 // pred_region
          _
        $region24: #{tpu_custom_call.1} parent=11 // pred_fallthru
          _
      $region12: #{tpu_custom_call.1} parent=5 // pred_fallthru
        _
      %p179 = scmp.lt.s32.totalorder %s14, 2
      // Predicated region
      $region25: #{tpu_custom_call.1} parent=5 // pred_check
        %p180 = pneg %p179
      $region26: #{tpu_custom_call.1} parent=5 // pred_check_branch
        %182 = sbr.rel (%p180) target = $region28
      $region27: #{tpu_custom_call.1} parent=5 // pred_region
        // Predicated region
        $region29: #{tpu_custom_call.1} parent=27 // pred_check
          %p183 = pneg %p34
        $region30: #{tpu_custom_call.1} parent=27 // pred_check_branch
          %185 = sbr.rel (%p183) target = $region32
        $region31: #{tpu_custom_call.1} parent=27 // pred_region
          %p186 = scmp.lt.s32.totalorder %s14, 1
          %s187 = scalar_select %p186, %s14, 1
          %s188 = smul.addr %s187, 5
          %s189 = smul.addr %s188, 4
          %s190 = scalar_lea.vmem %s0, %s189
        $region32: #{tpu_custom_call.1} parent=27 // pred_fallthru
          _
        // Predicated region
        $region33: #{tpu_custom_call.1} parent=27 // pred_check
          %p191 = pneg %p102
        $region34: #{tpu_custom_call.1} parent=27 // pred_check_branch
          %193 = sbr.rel (%p191) target = $region36
        $region35: #{tpu_custom_call.1} parent=27 // pred_region
          %p194 = scmp.lt.s32.totalorder %s14, 1
          %s195 = scalar_select %p194, %s14, 1
          %s196 = smul.addr %s195, 48
          %s197 = smul.addr %s196, 4
          %s198 = scalar_lea.vmem %s3, %s197
        $region36: #{tpu_custom_call.1} parent=27 // pred_fallthru
          _
      $region28: #{tpu_custom_call.1} parent=5 // pred_fallthru
        _
      %p199 = scmp.le.s32.totalorder 1, %s14
      %p200 = scmp.lt.s32.totalorder %s14, 3
      %p201 = pnand %p199, %p200
      %p202 = pneg %p201
      // Predicated region
      $region37: #{tpu_custom_call.1} parent=5 // pred_check
        _
      $region38: #{tpu_custom_call.1} parent=5 // pred_check_branch
        %204 = sbr.rel (%p201) target = $region40
      $region39: #{tpu_custom_call.1} parent=5 // pred_region
        %s205 = ssub.s32 %s14, 1
        %p206 = scmp.lt.s32.totalorder %s19, 1
        %s207 = scalar_select %p206, %s19, 1
        %s208 = smul.addr %s207, 5
        %s209 = smul.addr %s208, 4
        %s210 = scalar_lea.vmem %s0, %s209
        %p211 = pneg %p40
        %p212 = pneg %p37
        %p213 = pneg %p61
        %p214 = pneg %p58
        %p215 = pneg %p82
        %p216 = pneg %p79
        %p217 = scmp.lt.s32.totalorder %s19, 1
        %s218 = scalar_select %p217, %s19, 1
        %s219 = smul.addr %s218, 48
        %s220 = smul.addr %s219, 4
        %s221 = scalar_lea.vmem %s3, %s220
        %p222 = pneg %p108
        %p223 = pneg %p105
        %p224 = pneg %p129
        %p225 = pneg %p126
        %p226 = pneg %p155
        %p227 = pneg %p152
        %s228 = sand.u32 %s142, 1
        %s229 = scalar_lea.sflag [#allocation3], %s228
        %s230 = sand.u32 %s142, 1
        %s231 = smul.addr %s230, 8
        %s232 = scalar_lea.vmem [#allocation2], %s231
        %p233 = scmp.lt.s32.totalorder %s19, 1
        %s234 = scalar_select %p233, %s19, 1
        %s235 = smul.addr %s234, 5
        %s236 = smul.addr %s235, 4
        %s237 = scalar_lea.vmem %s0, %s236
        %p238 = scmp.lt.s32.totalorder %s19, 1
        %s239 = scalar_select %p238, %s19, 1
        %s240 = smul.addr %s239, 48
        %s241 = smul.addr %s240, 4
        %s242 = scalar_lea.vmem %s3, %s241
        %v244 = vld [vmem:[%s237] sm:$0x77]
        %v245 = vld [vmem:[%s237 + $0x8] sm:$0x77]
        %v246 = vld [vmem:[%s237 + $0x10] sm:$0x7]
        %v247 = vld [vmem:[%s1] sm:$0xff]
        %v248 = vld [vmem:[%s1 + $0x8] sm:$0xff]
        %v249 = vld [vmem:[%s2] sm:$0xff]
        %v250 = vld [vmem:[%s2 + $0x8] sm:$0xff]
        %252 = vset.pattern.permute.xlu0 0
        %253 = vperm.xlu0 %252, %v247
        %v254 = vpop.permute.xlu0 %253
        %257 = vset.pattern.permute.xlu0 0
        %258 = vperm.xlu0 %257, %v248
        %v259 = vpop.permute.xlu0 %258
        %v264 = vlaneseq
        %v265 = vshrl.u32 %v264, 7
        %v266 = vsub.s32 0, %v265
        %v267 = vrot.slane %v244, %v266
        %v268 = vlaneseq
        %v269 = vshrl.u32 %v268, 7
        %v270 = vsub.s32 4, %v269
        %v271 = vrot.slane %v244, %v270
        %v272 = vlaneseq
        %v273 = vshrl.u32 %v272, 7
        %v274 = vsub.s32 0, %v273
        %v275 = vrot.slane %v245, %v274
        %v276 = vlaneseq
        %v277 = vshrl.u32 %v276, 7
        %v278 = vsub.s32 4, %v277
        %v279 = vrot.slane %v245, %v278
        %v280 = vlaneseq
        %v281 = vshrl.u32 %v280, 7
        %v282 = vsub.s32 0, %v281
        %v283 = vrot.slane %v246, %v282
        %v289 = vlaneseq
        %v290 = vshrl.u32 %v289, 7
        %v291 = vsub.s32 0, %v290
        %v292 = vrot.slane %v267, %v291
        %v293 = vlaneseq
        %v294 = vshrl.u32 %v293, 7
        %v295 = vsub.s32 0, %v294
        %v296 = vrot.slane %v271, %v295
        %v297 = vlaneseq
        %v298 = vshrl.u32 %v297, 7
        %v299 = vsub.s32 0, %v298
        %v300 = vrot.slane %v275, %v299
        %v301 = vlaneseq
        %v302 = vshrl.u32 %v301, 7
        %v303 = vsub.s32 0, %v302
        %v304 = vrot.slane %v279, %v303
        %v305 = vlaneseq
        %v306 = vshrl.u32 %v305, 7
        %v307 = vsub.s32 0, %v306
        %v308 = vrot.slane %v283, %v307
        %v309 = vmul.f32 %v254, %v292
        %v310 = vmul.f32 %v254, %v296
        %v311 = vmul.f32 %v254, %v300
        %v312 = vmul.f32 %v254, %v304
        %v313 = vmul.f32 %v254, %v308
        %v314 = vmul.f32 %v259, %v292
        %v315 = vmul.f32 %v259, %v296
        %v316 = vmul.f32 %v259, %v300
        %v317 = vmul.f32 %v259, %v304
        %v318 = vmul.f32 %v259, %v308
        %320 = vset.pattern.permute.xlu0 0
        %321 = vperm.xlu0 %320, %v249
        %v322 = vpop.permute.xlu0 %321
        %325 = vset.pattern.permute.xlu0 0
        %326 = vperm.xlu0 %325, %v250
        %v327 = vpop.permute.xlu0 %326
        %v329 = vadd.f32 %v322, %v309
        %v330 = vadd.f32 %v322, %v310
        %v331 = vadd.f32 %v322, %v311
        %v332 = vadd.f32 %v322, %v312
        %v333 = vadd.f32 %v322, %v313
        %v334 = vadd.f32 %v327, %v314
        %v335 = vadd.f32 %v327, %v315
        %v336 = vadd.f32 %v327, %v316
        %v337 = vadd.f32 %v327, %v317
        %v338 = vadd.f32 %v327, %v318
        %339 = vset.pattern.permute.xlu0 1
        %340 = vperm.xlu0 %339, %v247
        %v341 = vpop.permute.xlu0 %340
        %343 = vset.pattern.permute.xlu0 1
        %344 = vperm.xlu0 %343, %v248
        %v345 = vpop.permute.xlu0 %344
        %v347 = vlaneseq
        %v348 = vshrl.u32 %v347, 7
        %v349 = vsub.s32 1, %v348
        %v350 = vrot.slane %v244, %v349
        %v351 = vlaneseq
        %v352 = vshrl.u32 %v351, 7
        %v353 = vsub.s32 5, %v352
        %v354 = vrot.slane %v244, %v353
        %v355 = vlaneseq
        %v356 = vshrl.u32 %v355, 7
        %v357 = vsub.s32 1, %v356
        %v358 = vrot.slane %v245, %v357
        %v359 = vlaneseq
        %v360 = vshrl.u32 %v359, 7
        %v361 = vsub.s32 5, %v360
        %v362 = vrot.slane %v245, %v361
        %v363 = vlaneseq
        %v364 = vshrl.u32 %v363, 7
        %v365 = vsub.s32 1, %v364
        %v366 = vrot.slane %v246, %v365
        %v372 = vlaneseq
        %v373 = vshrl.u32 %v372, 7
        %v374 = vsub.s32 1, %v373
        %v375 = vrot.slane %v350, %v374
        %v376 = vlaneseq
        %v377 = vshrl.u32 %v376, 7
        %v378 = vsub.s32 1, %v377
        %v379 = vrot.slane %v354, %v378
        %v380 = vlaneseq
        %v381 = vshrl.u32 %v380, 7
        %v382 = vsub.s32 1, %v381
        %v383 = vrot.slane %v358, %v382
        %v384 = vlaneseq
        %v385 = vshrl.u32 %v384, 7
        %v386 = vsub.s32 1, %v385
        %v387 = vrot.slane %v362, %v386
        %v388 = vlaneseq
        %v389 = vshrl.u32 %v388, 7
        %v390 = vsub.s32 1, %v389
        %v391 = vrot.slane %v366, %v390
        %v392 = vmul.f32 %v341, %v375
        %v393 = vmul.f32 %v341, %v379
        %v394 = vmul.f32 %v341, %v383
        %v395 = vmul.f32 %v341, %v387
        %v396 = vmul.f32 %v341, %v391
        %v397 = vmul.f32 %v345, %v375
        %v398 = vmul.f32 %v345, %v379
        %v399 = vmul.f32 %v345, %v383
        %v400 = vmul.f32 %v345, %v387
        %v401 = vmul.f32 %v345, %v391
        %v402 = vadd.f32 %v329, %v392
        %v403 = vadd.f32 %v330, %v393
        %v404 = vadd.f32 %v331, %v394
        %v405 = vadd.f32 %v332, %v395
        %v406 = vadd.f32 %v333, %v396
        %v407 = vadd.f32 %v334, %v397
        %v408 = vadd.f32 %v335, %v398
        %v409 = vadd.f32 %v336, %v399
        %v410 = vadd.f32 %v337, %v400
        %v411 = vadd.f32 %v338, %v401
        %412 = vset.pattern.permute.xlu0 2
        %413 = vperm.xlu0 %412, %v247
        %v414 = vpop.permute.xlu0 %413
        %416 = vset.pattern.permute.xlu0 2
        %417 = vperm.xlu0 %416, %v248
        %v418 = vpop.permute.xlu0 %417
        %v420 = vlaneseq
        %v421 = vshrl.u32 %v420, 7
        %v422 = vsub.s32 2, %v421
        %v423 = vrot.slane %v244, %v422
        %v424 = vlaneseq
        %v425 = vshrl.u32 %v424, 7
        %v426 = vsub.s32 6, %v425
        %v427 = vrot.slane %v244, %v426
        %v428 = vlaneseq
        %v429 = vshrl.u32 %v428, 7
        %v430 = vsub.s32 2, %v429
        %v431 = vrot.slane %v245, %v430
        %v432 = vlaneseq
        %v433 = vshrl.u32 %v432, 7
        %v434 = vsub.s32 6, %v433
        %v435 = vrot.slane %v245, %v434
        %v436 = vlaneseq
        %v437 = vshrl.u32 %v436, 7
        %v438 = vsub.s32 2, %v437
        %v439 = vrot.slane %v246, %v438
        %v445 = vlaneseq
        %v446 = vshrl.u32 %v445, 7
        %v447 = vsub.s32 2, %v446
        %v448 = vrot.slane %v423, %v447
        %v449 = vlaneseq
        %v450 = vshrl.u32 %v449, 7
        %v451 = vsub.s32 2, %v450
        %v452 = vrot.slane %v427, %v451
        %v453 = vlaneseq
        %v454 = vshrl.u32 %v453, 7
        %v455 = vsub.s32 2, %v454
        %v456 = vrot.slane %v431, %v455
        %v457 = vlaneseq
        %v458 = vshrl.u32 %v457, 7
        %v459 = vsub.s32 2, %v458
        %v460 = vrot.slane %v435, %v459
        %v461 = vlaneseq
        %v462 = vshrl.u32 %v461, 7
        %v463 = vsub.s32 2, %v462
        %v464 = vrot.slane %v439, %v463
        %v465 = vmul.f32 %v414, %v448
        %v466 = vmul.f32 %v414, %v452
        %v467 = vmul.f32 %v414, %v456
        %v468 = vmul.f32 %v414, %v460
        %v469 = vmul.f32 %v414, %v464
        %v470 = vmul.f32 %v418, %v448
        %v471 = vmul.f32 %v418, %v452
        %v472 = vmul.f32 %v418, %v456
        %v473 = vmul.f32 %v418, %v460
        %v474 = vmul.f32 %v418, %v464
        %v475 = vadd.f32 %v402, %v465
        %v476 = vadd.f32 %v403, %v466
        %v477 = vadd.f32 %v404, %v467
        %v478 = vadd.f32 %v405, %v468
        %v479 = vadd.f32 %v406, %v469
        %v480 = vadd.f32 %v407, %v470
        %v481 = vadd.f32 %v408, %v471
        %v482 = vadd.f32 %v409, %v472
        %v483 = vadd.f32 %v410, %v473
        %v484 = vadd.f32 %v411, %v474
        %v485 = vmax.f32 %v475, 0.0
        %v486 = vmax.f32 %v476, 0.0
        %v487 = vmax.f32 %v477, 0.0
        %v488 = vmax.f32 %v478, 0.0
        %v489 = vmax.f32 %v479, 0.0
        %v490 = vmax.f32 %v480, 0.0
        %v491 = vmax.f32 %v481, 0.0
        %v492 = vmax.f32 %v482, 0.0
        %v493 = vmax.f32 %v483, 0.0
        %v494 = vmax.f32 %v484, 0.0
        %v495 = vpack.c.bf16 %v490, %v485
        %v496 = vpack.c.bf16 %v491, %v486
        %v497 = vpack.c.bf16 %v492, %v487
        %v498 = vpack.c.bf16 %v493, %v488
        %v499 = vpack.c.bf16 %v494, %v489
        %v500 = vld [vmem:[%s242] sm:$0xf]
        %v501 = vld [vmem:[%s242 + $0x4] sm:$0xf]
        %v502 = vld [vmem:[%s242 + $0x8] sm:$0xf]
        %v503 = vld [vmem:[%s242 + $0xc] sm:$0xf]
        %v504 = vld [vmem:[%s242 + $0x10] sm:$0xf]
        %v505 = vld [vmem:[%s242 + $0x14] sm:$0xf]
        %v506 = vld [vmem:[%s242 + $0x18] sm:$0xf]
        %v507 = vld [vmem:[%s242 + $0x1c] sm:$0xf]
        %v508 = vld [vmem:[%s242 + $0x20] sm:$0xf]
        %v509 = vld [vmem:[%s242 + $0x24] sm:$0xf]
        %v510 = vld [vmem:[%s242 + $0x28] sm:$0xf]
        %v511 = vld [vmem:[%s242 + $0x2c] sm:$0xf]
        %v512 = vld [vmem:[%s242 + $0x30] sm:$0xf]
        %v513 = vld [vmem:[%s242 + $0x34] sm:$0xf]
        %v514 = vld [vmem:[%s242 + $0x38] sm:$0xf]
        %v515 = vld [vmem:[%s242 + $0x3c] sm:$0xf]
        %v516 = vld [vmem:[%s242 + $0x40] sm:$0xf]
        %v517 = vld [vmem:[%s242 + $0x44] sm:$0xf]
        %v518 = vld [vmem:[%s242 + $0x48] sm:$0xf]
        %v519 = vld [vmem:[%s242 + $0x4c] sm:$0xf]
        %v520 = vld [vmem:[%s242 + $0x50] sm:$0xf]
        %v521 = vld [vmem:[%s242 + $0x54] sm:$0xf]
        %v522 = vld [vmem:[%s242 + $0x58] sm:$0xf]
        %v523 = vld [vmem:[%s242 + $0x5c] sm:$0xf]
        %v524 = vld [vmem:[%s242 + $0x60] sm:$0xf]
        %v525 = vld [vmem:[%s242 + $0x64] sm:$0xf]
        %v526 = vld [vmem:[%s242 + $0x68] sm:$0xf]
        %v527 = vld [vmem:[%s242 + $0x6c] sm:$0xf]
        %v528 = vld [vmem:[%s242 + $0x70] sm:$0xf]
        %v529 = vld [vmem:[%s242 + $0x74] sm:$0xf]
        %v530 = vld [vmem:[%s242 + $0x78] sm:$0xf]
        %v531 = vld [vmem:[%s242 + $0x7c] sm:$0xf]
        %v532 = vld [vmem:[%s242 + $0x80] sm:$0xf]
        %v533 = vld [vmem:[%s242 + $0x84] sm:$0xf]
        %v534 = vld [vmem:[%s242 + $0x88] sm:$0xf]
        %v535 = vld [vmem:[%s242 + $0x8c] sm:$0xf]
        %v536 = vld [vmem:[%s242 + $0x90] sm:$0xf]
        %v537 = vld [vmem:[%s242 + $0x94] sm:$0xf]
        %v538 = vld [vmem:[%s242 + $0x98] sm:$0xf]
        %v539 = vld [vmem:[%s242 + $0x9c] sm:$0xf]
        %v540 = vld [vmem:[%s242 + $0xa0] sm:$0xf]
        %v541 = vld [vmem:[%s242 + $0xa4] sm:$0xf]
        %v542 = vld [vmem:[%s242 + $0xa8] sm:$0xf]
        %v543 = vld [vmem:[%s242 + $0xac] sm:$0xf]
        %v544 = vld [vmem:[%s242 + $0xb0] sm:$0xf]
        %v545 = vld [vmem:[%s242 + $0xb4] sm:$0xf]
        %v546 = vld [vmem:[%s242 + $0xb8] sm:$0xf]
        %v547 = vld [vmem:[%s242 + $0xbc] sm:$0xf]
        %v596 = vunpack.c.l.b16 %v500
        %v597 = vunpack.c.l.b16 %v501
        %v598 = vunpack.c.l.b16 %v502
        %v599 = vunpack.c.l.b16 %v503
        %v600 = vunpack.c.l.b16 %v504
        %v601 = vunpack.c.l.b16 %v505
        %v602 = vunpack.c.l.b16 %v506
        %v603 = vunpack.c.l.b16 %v507
        %v604 = vunpack.c.l.b16 %v508
        %v605 = vunpack.c.l.b16 %v509
        %v606 = vunpack.c.l.b16 %v510
        %v607 = vunpack.c.l.b16 %v511
        %v608 = vunpack.c.l.b16 %v512
        %v609 = vunpack.c.l.b16 %v513
        %v610 = vunpack.c.l.b16 %v514
        %v611 = vunpack.c.l.b16 %v515
        %v612 = vunpack.c.l.b16 %v516
        %v613 = vunpack.c.l.b16 %v517
        %v614 = vunpack.c.l.b16 %v518
        %v615 = vunpack.c.l.b16 %v519
        %v616 = vunpack.c.l.b16 %v520
        %v617 = vunpack.c.l.b16 %v521
        %v618 = vunpack.c.l.b16 %v522
        %v619 = vunpack.c.l.b16 %v523
        %v620 = vunpack.c.l.b16 %v524
        %v621 = vunpack.c.l.b16 %v525
        %v622 = vunpack.c.l.b16 %v526
        %v623 = vunpack.c.l.b16 %v527
        %v624 = vunpack.c.l.b16 %v528
        %v625 = vunpack.c.l.b16 %v529
        %v626 = vunpack.c.l.b16 %v530
        %v627 = vunpack.c.l.b16 %v531
        %v628 = vunpack.c.l.b16 %v532
        %v629 = vunpack.c.l.b16 %v533
        %v630 = vunpack.c.l.b16 %v534
        %v631 = vunpack.c.l.b16 %v535
        %v632 = vunpack.c.l.b16 %v536
        %v633 = vunpack.c.l.b16 %v537
        %v634 = vunpack.c.l.b16 %v538
        %v635 = vunpack.c.l.b16 %v539
        %v636 = vunpack.c.l.b16 %v540
        %v637 = vunpack.c.l.b16 %v541
        %v638 = vunpack.c.l.b16 %v542
        %v639 = vunpack.c.l.b16 %v543
        %v640 = vunpack.c.l.b16 %v544
        %v641 = vunpack.c.l.b16 %v545
        %v642 = vunpack.c.l.b16 %v546
        %v643 = vunpack.c.l.b16 %v547
        %v644 = vpack.c.b16 %v597, %v596
        %v645 = vpack.c.b16 %v599, %v598
        %v646 = vpack.c.b16 %v601, %v600
        %v647 = vpack.c.b16 %v603, %v602
        %v648 = vpack.c.b16 %v605, %v604
        %v649 = vpack.c.b16 %v607, %v606
        %v650 = vpack.c.b16 %v609, %v608
        %v651 = vpack.c.b16 %v611, %v610
        %v652 = vpack.c.b16 %v613, %v612
        %v653 = vpack.c.b16 %v615, %v614
        %v654 = vpack.c.b16 %v617, %v616
        %v655 = vpack.c.b16 %v619, %v618
        %v656 = vpack.c.b16 %v621, %v620
        %v657 = vpack.c.b16 %v623, %v622
        %v658 = vpack.c.b16 %v625, %v624
        %v659 = vpack.c.b16 %v627, %v626
        %v660 = vpack.c.b16 %v629, %v628
        %v661 = vpack.c.b16 %v631, %v630
        %v662 = vpack.c.b16 %v633, %v632
        %v663 = vpack.c.b16 %v635, %v634
        %v664 = vpack.c.b16 %v637, %v636
        %v665 = vpack.c.b16 %v639, %v638
        %v666 = vpack.c.b16 %v641, %v640
        %v667 = vpack.c.b16 %v643, %v642
        %692 = vmatprep.subr.bf16.mxu0 0
        %693 = vmatpush1.bf16.msra.mxu0 %v644
        %694 = vmatprep.subr.bf16.mxu0 0
        %695 = vmatpush1.bf16.msra.mxu0 %v645
        %696 = vmatprep.subr.bf16.mxu0 0
        %697 = vmatpush1.bf16.msra.mxu0 %v646
        %698 = vmatprep.subr.bf16.mxu0 0
        %699 = vmatpush1.bf16.msra.mxu0 %v647
        %700 = vmatprep.subr.bf16.mxu0 0
        %701 = vmatpush1.bf16.msra.mxu0 %v648
        %702 = vmatprep.subr.bf16.mxu0 0
        %703 = vmatpush1.bf16.msra.mxu0 %v649
        %704 = vmatprep.subr.bf16.mxu0 0
        %705 = vmatpush1.bf16.msra.mxu0 %v650
        %706 = vmatprep.subr.bf16.mxu0 0
        %707 = vmatpush1.bf16.msra.mxu0 %v651
        %708 = vmatprep.subr.bf16.mxu0 0
        %709 = vmatpush1.bf16.msra.mxu0 %v652
        %710 = vmatprep.subr.bf16.mxu0 0
        %711 = vmatpush1.bf16.msra.mxu0 %v653
        %712 = vmatprep.subr.bf16.mxu0 0
        %713 = vmatpush1.bf16.msra.mxu0 %v654
        %714 = vmatprep.subr.bf16.mxu0 0
        %715 = vmatpush1.bf16.msra.mxu0 %v655
        %716 = vmatprep.subr.bf16.mxu0 0
        %717 = vmatpush1.bf16.msra.mxu0 %v656
        %718 = vmatprep.subr.bf16.mxu0 0
        %719 = vmatpush1.bf16.msra.mxu0 %v657
        %720 = vmatprep.subr.bf16.mxu0 0
        %721 = vmatpush1.bf16.msra.mxu0 %v658
        %722 = vmatprep.subr.bf16.mxu0 0
        %723 = vmatpush1.bf16.msra.mxu0 %v659
        %724 = vmatprep.mubr.bf16.mxu0 %v496
        %725 = vmatmul.mubr.bf16.gmra.mrb[0].mxu0 %v495
        %v726 = vpop.f32.mrb[0].mxu0
        %v727 = vadd.f32 0.0, %v726
        %v728 = vpop.f32.mrb[0].mxu0
        %v729 = vpop.f32.mrb[0].mxu0
        %v730 = vadd.f32 0.0, %v729
        %v731 = vpop.f32.mrb[0].mxu0
        %732 = vdwg.mxu0
        %733 = vmatprep.subr.bf16.mxu0 0
        %734 = vmatpush1.bf16.msra.mxu0 %v660
        %735 = vmatprep.subr.bf16.mxu0 0
        %736 = vmatpush1.bf16.msra.mxu0 %v661
        %737 = vmatprep.subr.bf16.mxu0 0
        %738 = vmatpush1.bf16.msra.mxu0 %v662
        %739 = vmatprep.subr.bf16.mxu0 0
        %740 = vmatpush1.bf16.msra.mxu0 %v663
        %741 = vmatprep.subr.bf16.mxu0 0
        %742 = vmatpush1.bf16.msra.mxu0 %v664
        %743 = vmatprep.subr.bf16.mxu0 0
        %744 = vmatpush1.bf16.msra.mxu0 %v665
        %745 = vmatprep.subr.bf16.mxu0 0
        %746 = vmatpush1.bf16.msra.mxu0 %v666
        %747 = vmatprep.subr.bf16.mxu0 0
        %748 = vmatpush1.bf16.msra.mxu0 %v667
        %749 = vmatprep.subr.bf16.mxu0 0
        %750 = vmatpush1.bf16.msra.mxu0 0
        %751 = vmatprep.subr.bf16.mxu0 0
        %752 = vmatpush1.bf16.msra.mxu0 0
        %753 = vmatprep.subr.bf16.mxu0 0
        %754 = vmatpush1.bf16.msra.mxu0 0
        %755 = vmatprep.subr.bf16.mxu0 0
        %756 = vmatpush1.bf16.msra.mxu0 0
        %757 = vmatprep.subr.bf16.mxu0 0
        %758 = vmatpush1.bf16.msra.mxu0 0
        %759 = vmatprep.subr.bf16.mxu0 0
        %760 = vmatpush1.bf16.msra.mxu0 0
        %761 = vmatprep.subr.bf16.mxu0 0
        %762 = vmatpush1.bf16.msra.mxu0 0
        %763 = vmatprep.subr.bf16.mxu0 0
        %764 = vmatpush1.bf16.msra.mxu0 0
        %765 = vmatprep.mubr.bf16.mxu0 0
        %766 = vmatmul.mubr.bf16.gmra.mrb[0].mxu0 %v497
        %v767 = vpop.f32.mrb[0].mxu0
        %v768 = vadd.f32 %v727, %v767
        %v769 = vpop.f32.mrb[0].mxu0
        %v770 = vpop.f32.mrb[0].mxu0
        %v771 = vadd.f32 %v730, %v770
        %v772 = vpop.f32.mrb[0].mxu0
        %773 = vdwg.mxu0
        %v774 = vmul.f32 %v768, %v768
        %v775 = vmul.f32 %v771, %v771
        %vm776 = vcmask 64512
        %v777 = vsel %vm776, %v774, 0.0
        %v778 = vsel %vm776, %v775, 0.0
        %v779 = vadd.f32 %v777, %v778
        %v780 = vrot.slane %v779, 4
        %v781 = vadd.f32 %v779, %v780
        %v782 = vrot.slane %v781, 2
        %v783 = vadd.f32 %v781, %v782
        %v784 = vrot.slane %v783, 1
        %v785 = vadd.f32 %v783, %v784
        %v786 = vmax.f32 %v785, 1e-24
        %v787 = vrsqrt.pop %v786
        %v788 = vmul.f32 %v768, %v787
        %v789 = vmul.f32 %v771, %v787
        %v790 = vpack.c.bf16 %v789, %v788
        %791 = vxpose.xlu0.c.b16.start [1/8] %v790, 128
        %792 = vxpose.xlu0.c.b16.cont [2/8] 0, 128
        %793 = vxpose.xlu0.c.b16.cont [3/8] 0, 128
        %794 = vxpose.xlu0.c.b16.cont [4/8] 0, 128
        %795 = vxpose.xlu0.c.b16.cont [5/8] 0, 128
        %796 = vxpose.xlu0.c.b16.cont [6/8] 0, 128
        %797 = vxpose.xlu0.c.b16.cont [7/8] 0, 128
        %798 = vxpose.xlu0.c.b16.end [8/8] 0, 128
        %v799 = vpop.trf.xlu0
        %v800 = vpop.trf.xlu0
        %v801 = vpop.trf.xlu0
        %v802 = vpop.trf.xlu0
        %v803 = vpop.trf.xlu0
        %v804 = vpop.trf.xlu0
        %v805 = vpop.trf.xlu0
        %v806 = vpop.trf.xlu0
        %vm807 = vcmask 130048
        %v809 = vsel %vm807, %v799, 0
        %811 = vmatprep.subr.bf16.mxu0 %v499
        %812 = vmatpush1.bf16.msra.mxu0 %v498
        %813 = vmatprep.subr.bf16.mxu0 0
        %814 = vmatpush1.bf16.msra.mxu0 0
        %815 = vmatprep.subr.bf16.mxu0 0
        %816 = vmatpush1.bf16.msra.mxu0 0
        %817 = vmatprep.subr.bf16.mxu0 0
        %818 = vmatpush1.bf16.msra.mxu0 0
        %819 = vmatprep.subr.bf16.mxu0 0
        %820 = vmatpush1.bf16.msra.mxu0 0
        %821 = vmatprep.subr.bf16.mxu0 0
        %822 = vmatpush1.bf16.msra.mxu0 0
        %823 = vmatprep.subr.bf16.mxu0 0
        %824 = vmatpush1.bf16.msra.mxu0 0
        %825 = vmatprep.subr.bf16.mxu0 0
        %826 = vmatpush1.bf16.msra.mxu0 0
        %827 = vmatprep.subr.bf16.mxu0 0
        %828 = vmatpush1.bf16.msra.mxu0 0
        %829 = vmatprep.subr.bf16.mxu0 0
        %830 = vmatpush1.bf16.msra.mxu0 0
        %831 = vmatprep.subr.bf16.mxu0 0
        %832 = vmatpush1.bf16.msra.mxu0 0
        %833 = vmatprep.subr.bf16.mxu0 0
        %834 = vmatpush1.bf16.msra.mxu0 0
        %835 = vmatprep.subr.bf16.mxu0 0
        %836 = vmatpush1.bf16.msra.mxu0 0
        %837 = vmatprep.subr.bf16.mxu0 0
        %838 = vmatpush1.bf16.msra.mxu0 0
        %839 = vmatprep.subr.bf16.mxu0 0
        %840 = vmatpush1.bf16.msra.mxu0 0
        %841 = vmatprep.subr.bf16.mxu0 0
        %842 = vmatpush1.bf16.msra.mxu0 0
        %843 = vmatprep.mubr.bf16.mxu0 0
        %844 = vmatmul.mubr.bf16.gmra.mrb[0].mxu0 %v809
        %v845 = vpop.f32.mrb[0].mxu0
        %v846 = vadd.f32 0.0, %v845
        %v847 = vpop.f32.mrb[0].mxu0
        %v848 = vadd.f32 0.0, %v847
        %v849 = vpop.f32.mrb[0].mxu0
        %v850 = vpop.f32.mrb[0].mxu0
        %851 = vdwg.mxu0
        %v852 = vpack.c.bf16 %v846, %v846
        %v853 = vpack.c.bf16 %v848, %v848
        %v854 = vld [vmem:[%s4] sm:$0xf]
        %v855 = vld [vmem:[%s4 + $0x4] sm:$0xf]
        %v856 = vld [vmem:[%s4 + $0x8] sm:$0xf]
        %v857 = vld [vmem:[%s4 + $0xc] sm:$0xf]
        %v858 = vld [vmem:[%s4 + $0x10] sm:$0xf]
        %v859 = vld [vmem:[%s4 + $0x14] sm:$0xf]
        %v860 = vld [vmem:[%s4 + $0x18] sm:$0xf]
        %v861 = vld [vmem:[%s4 + $0x1c] sm:$0xf]
        %v862 = vld [vmem:[%s4 + $0x20] sm:$0xf]
        %v863 = vld [vmem:[%s4 + $0x24] sm:$0xf]
        %v864 = vld [vmem:[%s4 + $0x28] sm:$0xf]
        %v865 = vld [vmem:[%s4 + $0x2c] sm:$0xf]
        %v866 = vld [vmem:[%s4 + $0x30] sm:$0xf]
        %v867 = vld [vmem:[%s4 + $0x34] sm:$0xf]
        %v868 = vld [vmem:[%s4 + $0x38] sm:$0xf]
        %v869 = vld [vmem:[%s4 + $0x3c] sm:$0xf]
        %v870 = vld [vmem:[%s4 + $0x40] sm:$0xf]
        %v871 = vld [vmem:[%s4 + $0x44] sm:$0xf]
        %v872 = vld [vmem:[%s4 + $0x48] sm:$0xf]
        %v873 = vld [vmem:[%s4 + $0x4c] sm:$0xf]
        %v874 = vld [vmem:[%s4 + $0x50] sm:$0xf]
        %v875 = vld [vmem:[%s4 + $0x54] sm:$0xf]
        %v876 = vld [vmem:[%s4 + $0x58] sm:$0xf]
        %v877 = vld [vmem:[%s4 + $0x5c] sm:$0xf]
        %v878 = vld [vmem:[%s4 + $0x60] sm:$0xf]
        %v879 = vld [vmem:[%s4 + $0x64] sm:$0xf]
        %v880 = vld [vmem:[%s4 + $0x68] sm:$0xf]
        %v881 = vld [vmem:[%s4 + $0x6c] sm:$0xf]
        %v882 = vld [vmem:[%s4 + $0x70] sm:$0xf]
        %v883 = vld [vmem:[%s4 + $0x74] sm:$0xf]
        %v884 = vld [vmem:[%s4 + $0x78] sm:$0xf]
        %v885 = vld [vmem:[%s4 + $0x7c] sm:$0xf]
        %v918 = vunpack.c.l.b16 %v854
        %v919 = vunpack.c.l.b16 %v855
        %v920 = vunpack.c.l.b16 %v856
        %v921 = vunpack.c.l.b16 %v857
        %v922 = vunpack.c.l.b16 %v858
        %v923 = vunpack.c.l.b16 %v859
        %v924 = vunpack.c.l.b16 %v860
        %v925 = vunpack.c.l.b16 %v861
        %v926 = vunpack.c.l.b16 %v862
        %v927 = vunpack.c.l.b16 %v863
        %v928 = vunpack.c.l.b16 %v864
        %v929 = vunpack.c.l.b16 %v865
        %v930 = vunpack.c.l.b16 %v866
        %v931 = vunpack.c.l.b16 %v867
        %v932 = vunpack.c.l.b16 %v868
        %v933 = vunpack.c.l.b16 %v869
        %v934 = vunpack.c.l.b16 %v870
        %v935 = vunpack.c.l.b16 %v871
        %v936 = vunpack.c.l.b16 %v872
        %v937 = vunpack.c.l.b16 %v873
        %v938 = vunpack.c.l.b16 %v874
        %v939 = vunpack.c.l.b16 %v875
        %v940 = vunpack.c.l.b16 %v876
        %v941 = vunpack.c.l.b16 %v877
        %v942 = vunpack.c.l.b16 %v878
        %v943 = vunpack.c.l.b16 %v879
        %v944 = vunpack.c.l.b16 %v880
        %v945 = vunpack.c.l.b16 %v881
        %v946 = vunpack.c.l.b16 %v882
        %v947 = vunpack.c.l.b16 %v883
        %v948 = vunpack.c.l.b16 %v884
        %v949 = vunpack.c.l.b16 %v885
        %v950 = vpack.c.b16 %v919, %v918
        %v951 = vpack.c.b16 %v921, %v920
        %v952 = vpack.c.b16 %v923, %v922
        %v953 = vpack.c.b16 %v925, %v924
        %v954 = vpack.c.b16 %v927, %v926
        %v955 = vpack.c.b16 %v929, %v928
        %v956 = vpack.c.b16 %v931, %v930
        %v957 = vpack.c.b16 %v933, %v932
        %v958 = vpack.c.b16 %v935, %v934
        %v959 = vpack.c.b16 %v937, %v936
        %v960 = vpack.c.b16 %v939, %v938
        %v961 = vpack.c.b16 %v941, %v940
        %v962 = vpack.c.b16 %v943, %v942
        %v963 = vpack.c.b16 %v945, %v944
        %v964 = vpack.c.b16 %v947, %v946
        %v965 = vpack.c.b16 %v949, %v948
        %982 = vmatprep.subr.bf16.mxu0 0
        %983 = vmatpush1.bf16.msra.mxu0 %v950
        %984 = vmatprep.subr.bf16.mxu0 0
        %985 = vmatpush1.bf16.msra.mxu0 %v951
        %986 = vmatprep.subr.bf16.mxu0 0
        %987 = vmatpush1.bf16.msra.mxu0 %v952
        %988 = vmatprep.subr.bf16.mxu0 0
        %989 = vmatpush1.bf16.msra.mxu0 %v953
        %990 = vmatprep.subr.bf16.mxu0 0
        %991 = vmatpush1.bf16.msra.mxu0 %v954
        %992 = vmatprep.subr.bf16.mxu0 0
        %993 = vmatpush1.bf16.msra.mxu0 %v955
        %994 = vmatprep.subr.bf16.mxu0 0
        %995 = vmatpush1.bf16.msra.mxu0 %v956
        %996 = vmatprep.subr.bf16.mxu0 0
        %997 = vmatpush1.bf16.msra.mxu0 %v957
        %998 = vmatprep.subr.bf16.mxu0 0
        %999 = vmatpush1.bf16.msra.mxu0 %v958
        %1000 = vmatprep.subr.bf16.mxu0 0
        %1001 = vmatpush1.bf16.msra.mxu0 %v959
        %1002 = vmatprep.subr.bf16.mxu0 0
        %1003 = vmatpush1.bf16.msra.mxu0 %v960
        %1004 = vmatprep.subr.bf16.mxu0 0
        %1005 = vmatpush1.bf16.msra.mxu0 %v961
        %1006 = vmatprep.subr.bf16.mxu0 0
        %1007 = vmatpush1.bf16.msra.mxu0 %v962
        %1008 = vmatprep.subr.bf16.mxu0 0
        %1009 = vmatpush1.bf16.msra.mxu0 %v963
        %1010 = vmatprep.subr.bf16.mxu0 0
        %1011 = vmatpush1.bf16.msra.mxu0 %v964
        %1012 = vmatprep.subr.bf16.mxu0 0
        %1013 = vmatpush1.bf16.msra.mxu0 %v965
        %1014 = vmatprep.mubr.bf16.mxu0 %v853
        %1015 = vmatmul.mubr.bf16.gmra.mrb[0].mxu0 %v852
        %v1016 = vpop.f32.mrb[0].mxu0
        %v1017 = vadd.f32 0.0, %v1016
        %v1018 = vpop.f32.mrb[0].mxu0
        %v1019 = vpop.f32.mrb[0].mxu0
        %v1020 = vpop.f32.mrb[0].mxu0
        %1021 = vdwg.mxu0
        %1022 = vst [vmem:[%s232] sm:$0xff] %v1017
        %s1023 = sand.u32 %s142, 1
        %s1024 = scalar_lea.sflag [#allocation3], %s1023
        %s1025 = sand.u32 %s142, 1
        %s1026 = smul.addr %s1025, 8
        %s1027 = scalar_lea.vmem [#allocation2], %s1026
        // Predicated region
        $region41: #{tpu_custom_call.1} parent=39 // pred_check
          %p1028 = pneg %p152
        $region42: #{tpu_custom_call.1} parent=39 // pred_check_branch
          %1030 = sbr.rel (%p1028) target = $region44
        $region43: #{tpu_custom_call.1} parent=39 // pred_region
          %s1032 = ssub.s32 128, 128
          %1033 = vsyncadd %s1024, %s1032
          %s1034 = smul.addr %s19, 128
          %s1035 = scalar_lea.hbm %s5, %s1034
          %s1037 = sshll.u32 %s1027, 4
          %s1038 = int_to_ptr.vmem [resolvable:$true] %s1037
          %1040 = dma.vmem_to_hbm [thread:$0]  %s1038, 128, %s1035, %s1024
        $region44: #{tpu_custom_call.1} parent=39 // pred_fallthru
          _
      $region40: #{tpu_custom_call.1} parent=5 // pred_fallthru
        _
      %p1041 = scmp.le.s32.totalorder 2, %s14
      // Predicated region
      $region45: #{tpu_custom_call.1} parent=5 // pred_check
        %p1042 = pneg %p1041
      $region46: #{tpu_custom_call.1} parent=5 // pred_check_branch
        %1044 = sbr.rel (%p1042) target = $region48
      $region47: #{tpu_custom_call.1} parent=5 // pred_region
        %s1045 = ssub.s32 %s14, 2
        // Predicated region
        $region49: #{tpu_custom_call.1} parent=47 // pred_check
          %p1046 = pneg %p158
        $region50: #{tpu_custom_call.1} parent=47 // pred_check_branch
          %1048 = sbr.rel (%p1046) target = $region52
        $region51: #{tpu_custom_call.1} parent=47 // pred_region
          %s1049 = sand.u32 %s143, 1
          %s1050 = scalar_lea.sflag [#allocation3], %s1049
          %s1051 = sand.u32 %s143, 1
          %s1052 = smul.addr %s1051, 8
          %s1053 = scalar_lea.vmem [#allocation2], %s1052
          %1054 = dma.done %s1050, 128
        $region52: #{tpu_custom_call.1} parent=47 // pred_fallthru
          _
      $region48: #{tpu_custom_call.1} parent=5 // pred_fallthru
        _
    $region6: #{tpu_custom_call.1} parent=1 // loop_footer
      %s18 = sadd.s32 1, %s14
    $region7: #{tpu_custom_call.1} parent=1 // loop_footer_branch
      %13 = sbr.rel target = $region3
    $region8: #{tpu_custom_call.1} parent=1 // loop_exit
      _
    %1055 = vsyncpa [#allocation3], 1
    %s1056 = scalar_lea.sflag [#allocation3], 1
    %1057 = vsyncpa %s1056, 1

</llo_original>
